<compile_context>
chip_gen: v7x
topology: tpu7x:2x2x1
jax: 0.10.0
libtpu: 0.0.40
codegen_flags: <defaults>
</compile_context>

<pallas_src>
import functools

import jax
import jax.numpy as jnp
from jax.experimental import pallas as pl
from jax.experimental.pallas import tpu as pltpu


def _round_up(a: int, m: int) -> int:
    return (a + m - 1) // m * m


# ---------------------------------------------------------------------------
# Kernels
# ---------------------------------------------------------------------------
def _kernel_single_k(x_ref, w_ref, r_ref, b_ref, o_ref):
    """K fits in one block: no reduction axis, no scratch, no pl.when."""
    acc = jnp.dot(x_ref[...], w_ref[...], preferred_element_type=jnp.float32)
    o_ref[...] = (acc + b_ref[...] + r_ref[...].astype(jnp.float32)).astype(o_ref.dtype)


def _kernel_multi_k_f32_out(x_ref, w_ref, r_ref, b_ref, o_ref):
    """K reduction axis; the f32 output block is the accumulator (its block
    index ignores k, so it stays resident in VMEM across the k loop)."""
    k = pl.program_id(2)

    @pl.when(k == 0)
    def _():
        o_ref[...] = jnp.zeros_like(o_ref)

    o_ref[...] += jnp.dot(x_ref[...], w_ref[...], preferred_element_type=jnp.float32)

    @pl.when(k == pl.num_programs(2) - 1)
    def _():
        # Bias + residual exactly once per output tile (finalize branch).
        o_ref[...] = o_ref[...] + b_ref[...] + r_ref[...].astype(jnp.float32)


def _kernel_multi_k_scratch(x_ref, w_ref, r_ref, b_ref, o_ref, acc_ref):
    """K reduction axis with an f32 VMEM accumulator (non-f32 outputs)."""
    k = pl.program_id(2)

    @pl.when(k == 0)
    def _():
        acc_ref[...] = jnp.zeros_like(acc_ref)

    acc_ref[...] += jnp.dot(x_ref[...], w_ref[...], preferred_element_type=jnp.float32)

    @pl.when(k == pl.num_programs(2) - 1)
    def _():
        o_ref[...] = (acc_ref[...] + b_ref[...]
                      + r_ref[...].astype(jnp.float32)).astype(o_ref.dtype)


# ---------------------------------------------------------------------------
# Wrapper
# ---------------------------------------------------------------------------
def _default_tiles():
    """Generation-tuned (tm, tn, tk) defaults."""
    kind = ""
    try:
        kind = jax.devices()[0].device_kind.lower()
    except Exception:  # no devices / CPU fallback: use the conservative config
        pass
    if "v6" in kind:
        return 1024, 1024, 1024   # ~512 FLOP/byte; needs ~38 MiB scoped VMEM
    if "v7" in kind:
        return 512, 1024, 1024    # ~341 FLOP/byte; ~16 MiB, safe under 64 MiB/TC
    return 512, 512, 1024         # v5e / unknown: compute-bound, fits 16 MiB default


def _maybe_cast(a, dtype):
    return a if a.dtype == dtype else a.astype(dtype)


def _maybe_pad(a, shape):
    if tuple(a.shape) == tuple(shape):
        return a
    return jnp.pad(a, tuple((0, t - s) for s, t in zip(a.shape, shape)))


@functools.partial(jax.jit, static_argnums=(3, 4, 5))
def _residual_linear_impl(x, w, b, tm, tn, tk):
    N, H = x.shape
    out_dtype = x.dtype

    Mp = _round_up(N, tm)   # padded rows
    Np = _round_up(H, tn)   # padded output columns (lane-dense)
    Kp = _round_up(H, tk)   # padded contraction dim

    # Operand prep — emit a cast/pad pass only when actually required.
    x_lhs = _maybe_pad(_maybe_cast(x, jnp.bfloat16), (Mp, Kp))   # MXU LHS (bf16)
    w_p = _maybe_pad(_maybe_cast(w, jnp.bfloat16), (Kp, Np))     # MXU RHS (bf16)
    x_res = _maybe_pad(x, (Mp, Np))                              # residual, x.dtype
    b_p = _maybe_pad(_maybe_cast(b, jnp.float32).reshape(1, H), (1, Np))

    n_i, n_j, n_k = Mp // tm, Np // tn, Kp // tk

    if n_k == 1:
        grid = (n_i, n_j)
        kernel = _kernel_single_k
        in_specs = [
            pl.BlockSpec((tm, tk), lambda i, j: (i, 0)),   # matmul LHS
            pl.BlockSpec((tk, tn), lambda i, j: (0, j)),   # weights
            pl.BlockSpec((tm, tn), lambda i, j: (i, j)),   # residual x
            pl.BlockSpec((1, tn), lambda i, j: (0, j)),    # bias
        ]
        out_specs = pl.BlockSpec((tm, tn), lambda i, j: (i, j))
        scratch_shapes = []
        semantics = ("parallel", "parallel")
    else:
        grid = (n_i, n_j, n_k)                             # reduction axis LAST
        in_specs = [
            pl.BlockSpec((tm, tk), lambda i, j, k: (i, k)),
            pl.BlockSpec((tk, tn), lambda i, j, k: (k, j)),
            pl.BlockSpec((tm, tn), lambda i, j, k: (i, j)),
            pl.BlockSpec((1, tn), lambda i, j, k: (0, j)),
        ]
        out_specs = pl.BlockSpec((tm, tn), lambda i, j, k: (i, j))
        semantics = ("parallel", "parallel", "arbitrary")
        if out_dtype == jnp.float32:
            kernel = _kernel_multi_k_f32_out               # accumulate into o_ref
            scratch_shapes = []
        else:
            kernel = _kernel_multi_k_scratch
            scratch_shapes = [pltpu.VMEM((tm, tn), jnp.float32)]

    res_bytes = x.dtype.itemsize
    out_bytes = jnp.dtype(out_dtype).itemsize

    # Double-buffered block footprint + scratch -> scoped VMEM limit.
    est_vmem = 2 * (tm * tk * 2 + tk * tn * 2 + tm * tn * res_bytes
                    + tn * 4 + tm * tn * out_bytes)
    if scratch_shapes:
        est_vmem += tm * tn * 4
    vmem_limit = int(min(max(est_vmem * 1.4 + (4 << 20), 32 << 20), 56 << 20))

    # Realistic traffic: LHS panel re-read per j tile, W panel per i tile.
    cost = pl.CostEstimate(
        flops=2 * Mp * Np * Kp,
        transcendentals=0,
        bytes_accessed=(Mp * Kp * 2 * n_j
                        + Kp * Np * 2 * n_i
                        + Mp * Np * res_bytes
                        + Np * 4
                        + Mp * Np * out_bytes),
    )

    out = pl.pallas_call(
        kernel,
        out_shape=jax.ShapeDtypeStruct((Mp, Np), out_dtype),
        grid_spec=pltpu.PrefetchScalarGridSpec(
            num_scalar_prefetch=0,
            grid=grid,
            in_specs=in_specs,
            out_specs=out_specs,
            scratch_shapes=scratch_shapes,
        ),
        compiler_params=pltpu.CompilerParams(
            dimension_semantics=semantics,
            vmem_limit_bytes=vmem_limit,
        ),
        cost_estimate=cost,
    )(x_lhs, w_p, x_res, b_p)

    if (Mp, Np) != (N, H):
        out = out[:N, :H]
    return out


def residual_linear(x, w, b, *, tm=None, tn=None, tk=None):
    """out = x @ w + b + x  (Residual wrapper around a Linear layer)."""
    d_tm, d_tn, d_tk = _default_tiles()
    N, H = x.shape
    assert w.shape == (H, H) and b.shape == (H,)
    # Clamp tiles to the (padded) problem, keeping TPU alignment:
    # sublane dim multiple of 16 (bf16 packing), lane dim multiple of 128.
    tm = min(tm if tm is not None else d_tm, _round_up(N, 16))
    tn = min(tn if tn is not None else d_tn, _round_up(H, 128))
    tk = min(tk if tk is not None else d_tk, _round_up(H, 128))
    return _residual_linear_impl(x, w, b, tm, tn, tk)


if __name__ == "__main__":
    key = jax.random.PRNGKey(0)
    k_x, k_w, k_b = jax.random.split(key, 3)

    # --- Check 1: module-sized shape (batch=2, seq=8, hidden=32) ------------
    #     Single-tile grid -> collapsed-K fused kernel (no scratch, no when).
    batch, seq, hidden = 2, 8, 32
    x = jax.random.normal(k_x, (batch * seq, hidden), dtype=jnp.float32)
    w = jax.random.normal(k_w, (hidden, hidden), dtype=jnp.float32) * 0.02
    b = jax.random.normal(k_b, (hidden,), dtype=jnp.float32) * 0.02

    out = residual_linear(x, w, b)
    jax.block_until_ready(out)
    ref = x @ w + b + x
    assert out.shape == (batch * seq, hidden)
    assert jnp.allclose(out, ref, atol=1e-2, rtol=1e-2), float(
        jnp.max(jnp.abs(out - ref)))

    # --- Check 2: forced small tiles -> multi-tile (i, j, k) grid, f32 output
    #     accumulated directly into o_ref (no scratch path). ------------------
    n2, h2 = 144, 640
    x2 = jax.random.normal(k_x, (n2, h2), dtype=jnp.float32)
    w2 = jax.random.normal(k_w, (h2, h2), dtype=jnp.float32) * 0.02
    b2 = jax.random.normal(k_b, (h2,), dtype=jnp.float32) * 0.02
    out2 = residual_linear(x2, w2, b2, tm=128, tn=256, tk=256)
    jax.block_until_ready(out2)
    ref2 = (jnp.dot(x2.astype(jnp.bfloat16), w2.astype(jnp.bfloat16),
                    preferred_element_type=jnp.float32) + b2 + x2)
    assert out2.shape == (n2, h2)
    assert jnp.allclose(out2, ref2, atol=1e-3, rtol=1e-3), float(
        jnp.max(jnp.abs(out2 - ref2)))

    # --- Check 3: bf16 inputs/outputs -> multi-k grid with the f32 VMEM
    #     scratch-accumulator path (no host-side cast/pad emitted). -----------
    n3, h3 = 64, 256
    x3 = jax.random.normal(k_x, (n3, h3), dtype=jnp.float32).astype(jnp.bfloat16)
    w3 = (jax.random.normal(k_w, (h3, h3), dtype=jnp.float32) * 0.02).astype(jnp.bfloat16)
    b3 = jax.random.normal(k_b, (h3,), dtype=jnp.float32) * 0.02
    out3 = residual_linear(x3, w3, b3, tm=64, tn=128, tk=128)
    jax.block_until_ready(out3)
    ref3 = (jnp.dot(x3, w3, preferred_element_type=jnp.float32)
            + b3 + x3.astype(jnp.float32)).astype(jnp.bfloat16)
    assert out3.shape == (n3, h3) and out3.dtype == jnp.bfloat16
    assert jnp.allclose(out3.astype(jnp.float32), ref3.astype(jnp.float32),
                        atol=2e-2, rtol=2e-2), float(
        jnp.max(jnp.abs(out3.astype(jnp.float32) - ref3.astype(jnp.float32))))

    print("KERNEL_OK")
</pallas_src>

<mosaic_0001>
module attributes {stable_mosaic.version = 11 : i64} {
  func.func @_kernel_single_k(%arg0: i32, %arg1: i32, %arg2: memref<16x128xbf16, #tpu.memory_space<vmem>>, %arg3: memref<128x128xbf16, #tpu.memory_space<vmem>>, %arg4: memref<16x128xf32, #tpu.memory_space<vmem>>, %arg5: memref<1x128xf32, #tpu.memory_space<vmem>>, %arg6: memref<16x128xf32, #tpu.memory_space<vmem>>) attributes {dimension_semantics = [#tpu.dimension_semantics<parallel>, #tpu.dimension_semantics<parallel>], iteration_bounds = array<i64: 1, 1>, scalar_prefetch = 0 : i64, scratch_operands = 0 : i64, tpu.core_type = #tpu.core_type<tc>, window_params = [{transform_indices = @transform_0, window_bounds = array<i64: 16, 128>}, {transform_indices = @transform_1, window_bounds = array<i64: 128, 128>}, {transform_indices = @transform_2, window_bounds = array<i64: 16, 128>}, {transform_indices = @transform_3, window_bounds = array<i64: 1, 128>}, {transform_indices = @transform_4, window_bounds = array<i64: 16, 128>}]} {
    %c0 = arith.constant 0 : index
    %c0_0 = arith.constant 0 : index
    %0 = vector.load %arg2[%c0, %c0_0] : memref<16x128xbf16, #tpu.memory_space<vmem>>, vector<16x128xbf16>
    %c0_1 = arith.constant 0 : index
    %c0_2 = arith.constant 0 : index
    %1 = vector.load %arg3[%c0_1, %c0_2] : memref<128x128xbf16, #tpu.memory_space<vmem>>, vector<128x128xbf16>
    %cst = arith.constant dense<0.000000e+00> : vector<16x128xf32>
    %2 = tpu.matmul %0, %1, %cst {dimension_numbers = #tpu.dot_dimension_numbers<[1], [0], [0], [1], [0, 0, 1, 1], [], []>} : vector<16x128xbf16>, vector<128x128xbf16>, vector<16x128xf32> -> vector<16x128xf32>
    %c0_3 = arith.constant 0 : index
    %c0_4 = arith.constant 0 : index
    %3 = vector.load %arg5[%c0_3, %c0_4] : memref<1x128xf32, #tpu.memory_space<vmem>>, vector<1x128xf32>
    %4 = vector.broadcast %3 : vector<1x128xf32> to vector<16x128xf32>
    %5 = arith.addf %2, %4 : vector<16x128xf32>
    %c0_5 = arith.constant 0 : index
    %c0_6 = arith.constant 0 : index
    %6 = vector.load %arg4[%c0_5, %c0_6] : memref<16x128xf32, #tpu.memory_space<vmem>>, vector<16x128xf32>
    %7 = arith.addf %5, %6 : vector<16x128xf32>
    %c0_7 = arith.constant 0 : index
    %c0_8 = arith.constant 0 : index
    %8 = vector.load %arg6[%c0_7, %c0_8] : memref<16x128xf32, #tpu.memory_space<vmem>>, vector<16x128xf32>
    tpu.vector_store %arg6[%c0_7, %c0_8], %7 {strides = array<i32>} : memref<16x128xf32, #tpu.memory_space<vmem>>, vector<16x128xf32>,
    return
  }
  func.func @transform_0(%arg0: i32, %arg1: i32) -> (i32, i32) {
    %c0_i32 = arith.constant 0 : i32
    %c0_i32_0 = arith.constant 0 : i32
    return %arg0, %c0_i32 : i32, i32
  }
  func.func @transform_1(%arg0: i32, %arg1: i32) -> (i32, i32) {
    %c0_i32 = arith.constant 0 : i32
    %c0_i32_0 = arith.constant 0 : i32
    return %c0_i32, %arg1 : i32, i32
  }
  func.func @transform_2(%arg0: i32, %arg1: i32) -> (i32, i32) {
    %c0_i32 = arith.constant 0 : i32
    return %arg0, %arg1 : i32, i32
  }
  func.func @transform_3(%arg0: i32, %arg1: i32) -> (i32, i32) {
    %c0_i32 = arith.constant 0 : i32
    %c0_i32_0 = arith.constant 0 : i32
    return %c0_i32, %arg1 : i32, i32
  }
  func.func @transform_4(%arg0: i32, %arg1: i32) -> (i32, i32) {
    %c0_i32 = arith.constant 0 : i32
    return %arg0, %arg1 : i32, i32
  }
}

</mosaic_0001>

<llo_original>
// kernel: _residual_linear_impl.1
$region0: #{_residual_linear_impl.1}
  #allocation0 [shape = 'u32[]', space=smem, size = 0x4, offset = 0x4, fixed_abs, tag = 'smem constant byte address 0x4 - core index']
  #allocation1 [shape = 'u32[144,128]{1,0:T(1,128)}', space=vmem, size = 0x12000, scoped, tag = 'internal scratch']
  %s0 = inlined_call_operand.vmem [shape: bf16[16,128], index: 0, kind: input, shape index: {}]
  %s1 = inlined_call_operand.vmem [shape: bf16[128,128], index: 1, kind: input, shape index: {}]
  %s2 = inlined_call_operand.vmem [shape: f32[16,128], index: 2, kind: input, shape index: {}]
  %s3 = inlined_call_operand.vmem [shape: f32[1,128], index: 3, kind: input, shape index: {}]
  %s4 = inlined_call_operand.hbm [shape: f32[16,128], index: 4, kind: output, shape index: {}]
  %s5 = sld [smem:[#allocation0]]
  $region26: #{_residual_linear_impl.1} parent=0
    _
  %s7 = ssub.s32 1, %s5
  %s8 = scalar_select 0, %s7, %s5
  $region1: #{_residual_linear_impl.1} parent=0
    #allocation2 [shape = 'u8[8192]{0}', space=vmem, size = 0x2000, scoped, tag = 'output window, operand 0, single buffered']
    #allocation3 [shape = 's32[1]{0}', space=sflag, size = 0x4, scoped, tag = 'scoped memory for _residual_linear_impl.1']
    %9 = vsyncpa [#allocation3], 0
    // Predicated region
    $region2: #{_residual_linear_impl.1} parent=1 // pred_check
      _
    $region3: #{_residual_linear_impl.1} parent=1 // pred_check_branch
      %11 = sbr.rel (0) target = $region5
    $region4: #{_residual_linear_impl.1} parent=1 // pred_region
      _
    $region5: #{_residual_linear_impl.1} parent=1 // pred_fallthru
      _
    // Predicated region
    $region6: #{_residual_linear_impl.1} parent=1 // pred_check
      _
    $region7: #{_residual_linear_impl.1} parent=1 // pred_check_branch
      %13 = sbr.rel (0) target = $region9
    $region8: #{_residual_linear_impl.1} parent=1 // pred_region
      _
    $region9: #{_residual_linear_impl.1} parent=1 // pred_fallthru
      _
    // Predicated region
    $region10: #{_residual_linear_impl.1} parent=1 // pred_check
      _
    $region11: #{_residual_linear_impl.1} parent=1 // pred_check_branch
      %15 = sbr.rel (0) target = $region13
    $region12: #{_residual_linear_impl.1} parent=1 // pred_region
      _
    $region13: #{_residual_linear_impl.1} parent=1 // pred_fallthru
      _
    // Predicated region
    $region14: #{_residual_linear_impl.1} parent=1 // pred_check
      _
    $region15: #{_residual_linear_impl.1} parent=1 // pred_check_branch
      %17 = sbr.rel (0) target = $region17
    $region16: #{_residual_linear_impl.1} parent=1 // pred_region
      _
    $region17: #{_residual_linear_impl.1} parent=1 // pred_fallthru
      _
    %v19 = vld [vmem:[%s0] sm:$0xf]
    %v20 = vld [vmem:[%s0 + $0x4] sm:$0xf]
    %v21 = vld [vmem:[%s1] sm:$0xf]
    %v22 = vld [vmem:[%s1 + $0x4] sm:$0xf]
    %v23 = vld [vmem:[%s1 + $0x8] sm:$0xf]
    %v24 = vld [vmem:[%s1 + $0xc] sm:$0xf]
    %v25 = vld [vmem:[%s1 + $0x10] sm:$0xf]
    %v26 = vld [vmem:[%s1 + $0x14] sm:$0xf]
    %v27 = vld [vmem:[%s1 + $0x18] sm:$0xf]
    %v28 = vld [vmem:[%s1 + $0x1c] sm:$0xf]
    %v29 = vld [vmem:[%s1 + $0x20] sm:$0xf]
    %v30 = vld [vmem:[%s1 + $0x24] sm:$0xf]
    %v31 = vld [vmem:[%s1 + $0x28] sm:$0xf]
    %v32 = vld [vmem:[%s1 + $0x2c] sm:$0xf]
    %v33 = vld [vmem:[%s1 + $0x30] sm:$0xf]
    %v34 = vld [vmem:[%s1 + $0x34] sm:$0xf]
    %v35 = vld [vmem:[%s1 + $0x38] sm:$0xf]
    %v36 = vld [vmem:[%s1 + $0x3c] sm:$0xf]
    %v37 = vld [vmem:[%s3] sm:$0x1]
    %v39 = vlaneseq
    %v40 = vshrl.u32 %v39, 7
    %v41 = vsub.s32 0, %v40
    %v42 = vrot.slane %v37, %v41
    %v46 = vunpack.c.l.b16 %v19
    %v47 = vunpack.c.l.b16 %v20
    %v48 = vpack.c.b16 %v47, %v46
    %v66 = vunpack.c.l.b16 %v21
    %v67 = vunpack.c.l.b16 %v22
    %v68 = vunpack.c.l.b16 %v23
    %v69 = vunpack.c.l.b16 %v24
    %v70 = vunpack.c.l.b16 %v25
    %v71 = vunpack.c.l.b16 %v26
    %v72 = vunpack.c.l.b16 %v27
    %v73 = vunpack.c.l.b16 %v28
    %v74 = vunpack.c.l.b16 %v29
    %v75 = vunpack.c.l.b16 %v30
    %v76 = vunpack.c.l.b16 %v31
    %v77 = vunpack.c.l.b16 %v32
    %v78 = vunpack.c.l.b16 %v33
    %v79 = vunpack.c.l.b16 %v34
    %v80 = vunpack.c.l.b16 %v35
    %v81 = vunpack.c.l.b16 %v36
    %v82 = vpack.c.b16 %v67, %v66
    %v83 = vpack.c.b16 %v69, %v68
    %v84 = vpack.c.b16 %v71, %v70
    %v85 = vpack.c.b16 %v73, %v72
    %v86 = vpack.c.b16 %v75, %v74
    %v87 = vpack.c.b16 %v77, %v76
    %v88 = vpack.c.b16 %v79, %v78
    %v89 = vpack.c.b16 %v81, %v80
    %98 = vmatprep.subr.bf16.mxu0 0
    %99 = vmatpush1.bf16.msra.mxu0 %v82
    %100 = vmatprep.subr.bf16.mxu0 0
    %101 = vmatpush1.bf16.msra.mxu0 %v83
    %102 = vmatprep.subr.bf16.mxu0 0
    %103 = vmatpush1.bf16.msra.mxu0 %v84
    %104 = vmatprep.subr.bf16.mxu0 0
    %105 = vmatpush1.bf16.msra.mxu0 %v85
    %106 = vmatprep.subr.bf16.mxu0 0
    %107 = vmatpush1.bf16.msra.mxu0 %v86
    %108 = vmatprep.subr.bf16.mxu0 0
    %109 = vmatpush1.bf16.msra.mxu0 %v87
    %110 = vmatprep.subr.bf16.mxu0 0
    %111 = vmatpush1.bf16.msra.mxu0 %v88
    %112 = vmatprep.subr.bf16.mxu0 0
    %113 = vmatpush1.bf16.msra.mxu0 %v89
    %114 = vmatprep.subr.bf16.mxu0 0
    %115 = vmatpush1.bf16.msra.mxu0 0
    %116 = vmatprep.subr.bf16.mxu0 0
    %117 = vmatpush1.bf16.msra.mxu0 0
    %118 = vmatprep.subr.bf16.mxu0 0
    %119 = vmatpush1.bf16.msra.mxu0 0
    %120 = vmatprep.subr.bf16.mxu0 0
    %121 = vmatpush1.bf16.msra.mxu0 0
    %122 = vmatprep.subr.bf16.mxu0 0
    %123 = vmatpush1.bf16.msra.mxu0 0
    %124 = vmatprep.subr.bf16.mxu0 0
    %125 = vmatpush1.bf16.msra.mxu0 0
    %126 = vmatprep.subr.bf16.mxu0 0
    %127 = vmatpush1.bf16.msra.mxu0 0
    %128 = vmatprep.subr.bf16.mxu0 0
    %129 = vmatpush1.bf16.msra.mxu0 0
    %130 = vmatprep.mubr.bf16.mxu0 0
    %131 = vmatmul.mubr.bf16.gmra.mrb[0].mxu0 %v48
    %v132 = vpop.f32.mrb[0].mxu0
    %v133 = vadd.f32 %v42, %v132
    %v134 = vpop.f32.mrb[0].mxu0
    %v135 = vpop.f32.mrb[0].mxu0
    %v136 = vadd.f32 %v42, %v135
    %v137 = vpop.f32.mrb[0].mxu0
    %138 = vdwg.mxu0
    %v139 = vld [vmem:[%s2] sm:$0xff]
    %v140 = vld [vmem:[%s2 + $0x8] sm:$0xff]
    %v141 = vadd.f32 %v133, %v139
    %v142 = vadd.f32 %v136, %v140
    %143 = vst [vmem:[#allocation2] sm:$0xff] %v141
    %144 = vst [vmem:[#allocation2 + $0x8] sm:$0xff] %v142
    // Predicated region
    $region18: #{_residual_linear_impl.1} parent=1 // pred_check
      _
    $region19: #{_residual_linear_impl.1} parent=1 // pred_check_branch
      %146 = sbr.rel (0) target = $region21
    $region20: #{_residual_linear_impl.1} parent=1 // pred_region
      %s148 = ssub.s32 256, 256
      %149 = vsyncadd [#allocation3], %s148
      %s150 = sshll.u32 [#allocation2], 4
      %s151 = int_to_ptr.vmem [resolvable:$true] %s150
      %156 = dma.vmem_to_hbm [thread:$0]  %s151, 256, %s4, [#allocation3], 128, 128, 8
    $region21: #{_residual_linear_impl.1} parent=1 // pred_fallthru
      _
    // Predicated region
    $region22: #{_residual_linear_impl.1} parent=1 // pred_check
      _
    $region23: #{_residual_linear_impl.1} parent=1 // pred_check_branch
      %158 = sbr.rel (0) target = $region25
    $region24: #{_residual_linear_impl.1} parent=1 // pred_region
      %159 = dma.done [#allocation3], 256
    $region25: #{_residual_linear_impl.1} parent=1 // pred_fallthru
      _
    %160 = vsyncpa [#allocation3], 1

</llo_original>
